<compile_context>
chip_gen: v5e
topology: v5e:2x2
jax: 0.10.0
libtpu: 0.0.40
codegen_flags: <defaults>
</compile_context>

<pallas_src>
import functools
import math

import jax
import jax.numpy as jnp
from jax.experimental import pallas as pl
from jax.experimental.pallas import tpu as pltpu

_LANES = 128


def _scoring_kernel(K, num_layers, layer0_rows, PH, L,
                    cols_ref, wconv_ref, bconv_ref, wseg_ref, blin_ref,
                    out_ref, *scratch):
    """One batch tile of ScoringFunction.forward.

    cols_ref : (bpt, L, P*K*Cin)  im2col'd, lane-packed layer-0 input (compute dtype)
    wconv_ref: (layer0_rows + (num_layers-1)*K*PH, PH) packed block-diag conv weights
    bconv_ref: (num_layers, PH) f32 biases (tiled over the P packed sub-groups)
    wseg_ref : (PH, 128) f32 segmented Linear matrix (columns >= P are zero)
    blin_ref : (1, 1) f32 Linear bias
    out_ref  : (bpt, 128) f32; lane p holds the score of packed sub-group p
    scratch  : optional (bpt, L+2*pad, PH) padded-activation VMEM buffer
    """
    pad = K // 2
    bpt = cols_ref.shape[0]
    hp_ref = scratch[0] if scratch else None

    # Layer 0: single MXU matmul on the pre-im2col'd input; f32 accumulation,
    # bias + ReLU in f32.
    w0 = wconv_ref[0:layer0_rows, :]
    act = jnp.maximum(
        jnp.dot(cols_ref[...], w0, preferred_element_type=jnp.float32)
        + bconv_ref[0:1, :],
        0.0)                                                    # (bpt, L, PH) f32

    if num_layers > 1:
        # Keep the halo rows of the persistent padded scratch at zero; each
        # layer rewrites only the interior.
        hp_ref[:, :pad, :] = jnp.zeros((bpt, pad, PH), hp_ref.dtype)
        hp_ref[:, pad + L:, :] = jnp.zeros((bpt, pad, PH), hp_ref.dtype)

    for layer in range(1, num_layers):
        hp_ref[:, pad:pad + L, :] = act.astype(hp_ref.dtype)
        base = layer0_rows + (layer - 1) * K * PH
        acc = None
        for k in range(K):   # K accumulated matmuls; no im2col concat/temporary
            wk = wconv_ref[base + k * PH:base + (k + 1) * PH, :]
            part = jnp.dot(hp_ref[:, k:k + L, :], wk,
                           preferred_element_type=jnp.float32)
            acc = part if acc is None else acc + part
        act = jnp.maximum(acc + bconv_ref[layer:layer + 1, :], 0.0)

    # Epilogue in f32: pool over L first (so the final matmul is L times smaller),
    # then one small (bpt, PH) @ (PH, 128) matmul applying the per-group Linear
    # weights; lane-dense 128-wide output stores.
    pooled = jnp.sum(act, axis=1) * (1.0 / L)                   # (bpt, PH) f32
    out_ref[...] = (jnp.dot(pooled, wseg_ref[...],
                            preferred_element_type=jnp.float32)
                    + blin_ref[...])


def _round_up(x, m):
    return ((x + m - 1) // m) * m


def _vmem_capacity_bytes():
    try:
        cap = getattr(pltpu.get_tpu_info(), "vmem_capacity_bytes", None)
        if cap:
            return int(cap)
    except Exception:
        pass
    return 64 * 1024 * 1024   # conservative fallback (v7x per-TensorCore)


def _pick_pack(batch, hidden):
    """Largest lane-pack factor P such that P | batch and P*hidden <= 128 lanes."""
    best = 1
    for p in range(1, max(1, _LANES // max(hidden, 1)) + 1):
        if batch % p == 0:
            best = p
    return best


def _pick_batch_tile(bp, per_row_bytes, vmem_budget_bytes):
    """Largest packed-row tile that fits VMEM; keeps >=2 grid steps when possible."""
    # Valid tiles: divisors of bp that are the full axis (grid=1, exempt from the
    # sublane-8 rule) or multiples of 8 (aligned output blocks when tiling).
    valid = [d for d in range(1, bp + 1)
             if bp % d == 0 and (d == bp or d % 8 == 0)]
    max_rows = max(1, vmem_budget_bytes // max(per_row_bytes, 1))
    fitting = [d for d in valid if d <= max_rows] or [min(valid)]
    # Prefer >= 2 grid steps (pipelining + both v7x TensorCores) when bp allows;
    # the extra ~0.35 us/step is negligible on single-TC v5e/v6e.
    two_step = [d for d in fitting if bp // d >= 2]
    pool = two_step if (bp >= 16 and two_step) else fitting
    return max(pool)


def scoring_function(s, x, params, *, kernel_size, compute_dtype=jnp.bfloat16):
    """Pallas implementation of ScoringFunction.forward. Returns shape (B,)."""
    B, L = s.shape
    K = kernel_size
    assert K % 2 == 1, "only odd kernel_size matches PyTorch padding=K//2"
    pad = K // 2
    Lp = L + 2 * pad

    P = params["pack"]
    PH = params["conv_b"].shape[1]
    num_layers = params["conv_b"].shape[0]
    layer0_rows = params["layer0_rows"]
    cin = params["in_channels"]
    assert cin == 2 and B % P == 0
    Bp = B // P

    # Layout prep once in XLA/HBM: channels-last stack, zero halo, layer-0 im2col,
    # then pack P batch sub-groups side by side along the lane axis
    # (batch element p*Bp + r -> packed row r, lane block p).
    h0 = jnp.stack([s, x], axis=-1).astype(compute_dtype)        # (B, L, 2)
    h0 = jnp.pad(h0, ((0, 0), (pad, pad), (0, 0)))               # (B, Lp, 2)
    cols0 = jnp.concatenate([h0[:, k:k + L, :] for k in range(K)], axis=-1)
    c0 = K * cin
    cols0 = (cols0.reshape(P, Bp, L, c0)
                  .transpose(1, 2, 0, 3)
                  .reshape(Bp, L, P * c0))                       # (Bp, L, P*K*2)

    # Lane-padding-aware VMEM sizing from the device's real capacity
    # (64 MiB/TC on v7x, 128 MiB on v5e/v6e).
    cbytes = jnp.dtype(compute_dtype).itemsize
    in_pad = _round_up(P * c0, _LANES)
    ph_pad = _round_up(PH, _LANES)
    per_row = (2 * L * in_pad * cbytes                           # double-buffered input
               + (Lp * ph_pad * cbytes if num_layers > 1 else 0)  # hp scratch
               + 3 * L * ph_pad * 4                              # f32 acc/act temporaries
               + 2 * _LANES * 4)                                 # output block
    vmem_cap = _vmem_capacity_bytes()
    bpt = _pick_batch_tile(Bp, per_row, int(0.70 * vmem_cap))
    grid = (Bp // bpt,)

    kernel = functools.partial(_scoring_kernel, K, num_layers, layer0_rows, PH, L)
    scratch_shapes = ([pltpu.VMEM((bpt, Lp, PH), compute_dtype)]
                      if num_layers > 1 else [])

    out = pl.pallas_call(
        kernel,
        grid=grid,
        in_specs=[
            pl.BlockSpec((bpt, L, P * c0), lambda i: (i, 0, 0)),
            pl.BlockSpec(params["conv_w"].shape, lambda i: (0, 0)),
            pl.BlockSpec(params["conv_b"].shape, lambda i: (0, 0)),
            pl.BlockSpec(params["seg_w"].shape, lambda i: (0, 0)),
            pl.BlockSpec(params["lin_b"].shape, lambda i: (0, 0)),
        ],
        out_specs=pl.BlockSpec((bpt, _LANES), lambda i: (i, 0)),
        out_shape=jax.ShapeDtypeStruct((Bp, _LANES), jnp.float32),
        scratch_shapes=scratch_shapes,
        compiler_params=pltpu.CompilerParams(
            dimension_semantics=("parallel",),
            vmem_limit_bytes=int(0.85 * vmem_cap),
        ),
    )(cols0, params["conv_w"], params["conv_b"], params["seg_w"], params["lin_b"])

    # out[r, p] = score of batch element p*Bp + r; columns >= P are padding.
    return out[:, :P].T.reshape(B)


def init_torch_params(key, input_size, hidden_size, num_layers, kernel_size):
    """Deterministic params in PyTorch layout (Conv1d: (C_out, C_in, K), Linear: (1, H))."""
    conv_w, conv_b = [], []
    for i in range(num_layers):
        c_in = input_size if i == 0 else hidden_size
        key, kw, kb = jax.random.split(key, 3)
        bound = 1.0 / math.sqrt(c_in * kernel_size)
        conv_w.append(jax.random.uniform(kw, (hidden_size, c_in, kernel_size),
                                         jnp.float32, -bound, bound))
        conv_b.append(jax.random.uniform(kb, (hidden_size,), jnp.float32, -bound, bound))
    key, kw, kb = jax.random.split(key, 3)
    bound = 1.0 / math.sqrt(hidden_size)
    lin_w = jax.random.uniform(kw, (1, hidden_size), jnp.float32, -bound, bound)
    lin_b = jax.random.uniform(kb, (1,), jnp.float32, -bound, bound)
    return {"conv_w": conv_w, "conv_b": conv_b, "lin_w": lin_w, "lin_b": lin_b}


def _block_diag(m, p):
    r, c = m.shape
    out = jnp.zeros((p * r, p * c), m.dtype)
    for i in range(p):
        out = out.at[i * r:(i + 1) * r, i * c:(i + 1) * c].set(m)
    return out


def to_kernel_params(tp, *, kernel_size, pack, compute_dtype=jnp.bfloat16):
    """PyTorch layout -> lane-packed (block-diagonal), channels-last kernel layout."""
    K = kernel_size
    P = pack
    conv_ws = tp["conv_w"]
    H = conv_ws[0].shape[0]
    cin = conv_ws[0].shape[1]

    rows = []
    # Layer 0: im2col weight (K*Cin, H); row k*Cin+c multiplies input tap k, channel c.
    w0 = jnp.transpose(conv_ws[0], (2, 1, 0)).reshape(K * cin, H)
    rows.append(_block_diag(w0, P))
    layer0_rows = P * K * cin
    # Layers >= 1: one (H_in, H_out) matrix per tap, block-diagonal over P.
    for w in conv_ws[1:]:
        for k in range(K):
            rows.append(_block_diag(w[:, :, k].T, P))
    conv_w = jnp.concatenate(rows, axis=0).astype(compute_dtype)

    conv_b = jnp.stack([jnp.tile(b, P) for b in tp["conv_b"]],
                       axis=0).astype(jnp.float32)               # (num_layers, P*H)

    # Segmented mean-pool + Linear matrix: column p applies lin_w to sub-group p.
    lin_w = tp["lin_w"][0].astype(jnp.float32)                   # (H,)
    seg_w = jnp.zeros((P * H, _LANES), jnp.float32)
    for p in range(P):
        seg_w = seg_w.at[p * H:(p + 1) * H, p].set(lin_w)

    return {
        "conv_w": conv_w,
        "conv_b": conv_b,
        "seg_w": seg_w,
        "lin_b": tp["lin_b"][None, :].astype(jnp.float32),       # (1, 1)
        "pack": P,
        "layer0_rows": layer0_rows,
        "in_channels": cin,
    }


def reference_forward(s, x, tp, kernel_size):
    """Pure-JAX reference mirroring the PyTorch NCL semantics."""
    h = jnp.concatenate([s[:, None, :], x[:, None, :]], axis=1)  # (B, 2, L)
    for w, b in zip(tp["conv_w"], tp["conv_b"]):
        h = jax.lax.conv_general_dilated(
            h, w, window_strides=(1,),
            padding=[(kernel_size // 2, kernel_size // 2)],
            dimension_numbers=("NCH", "OIH", "NCH"))
        h = jax.nn.relu(h + b[None, :, None])
    pooled = h.mean(axis=-1)                                     # (B, H)
    return (pooled @ tp["lin_w"].T)[:, 0] + tp["lin_b"][0]       # (B,)


if __name__ == "__main__":
    configs = [
        # (B, L, hidden, num_layers): exercises P=4 lane packing, a 2-step grid
        # and the multi-layer scratch path.
        (64, 16, 32, 2),
        # Single conv layer: no inter-layer scratch, tiny batch (P=2 packing).
        (2, 16, 32, 1),
    ]
    kernel_size = 3
    input_size = 2

    key = jax.random.PRNGKey(0)
    for (B, L, hidden, num_layers) in configs:
        key, k_s, k_x, k_p = jax.random.split(key, 4)
        s = jax.random.normal(k_s, (B, L), jnp.float32)
        x = jax.random.normal(k_x, (B, L), jnp.float32)
        tp = init_torch_params(k_p, input_size, hidden, num_layers, kernel_size)
        ref = reference_forward(s, x, tp, kernel_size)
        P = _pick_pack(B, hidden)

        # f32 matmul operands: strict check against the pure-JAX reference.
        kp32 = to_kernel_params(tp, kernel_size=kernel_size, pack=P,
                                compute_dtype=jnp.float32)
        out32 = jax.block_until_ready(
            scoring_function(s, x, kp32, kernel_size=kernel_size,
                             compute_dtype=jnp.float32))
        assert out32.shape == (B,), out32.shape
        assert jnp.allclose(out32, ref, atol=1e-4, rtol=1e-4), (out32, ref)

        # bf16 matmul operands + f32 accumulation (default): loose tolerance
        # (inter-layer activations round-trip through the bf16 scratch).
        kpbf = to_kernel_params(tp, kernel_size=kernel_size, pack=P,
                                compute_dtype=jnp.bfloat16)
        outbf = jax.block_until_ready(
            scoring_function(s, x, kpbf, kernel_size=kernel_size,
                             compute_dtype=jnp.bfloat16))
        assert outbf.shape == (B,), outbf.shape
        assert jnp.allclose(outbf, ref, atol=5e-2, rtol=5e-2), (outbf, ref)

    print("KERNEL_OK")
</pallas_src>

<mosaic_0001>
module attributes {stable_mosaic.version = 11 : i64} {
  func.func @_scoring_kernel(%arg0: i32, %arg1: memref<8x16x24xf32, #tpu.memory_space<vmem>>, %arg2: memref<408x128xf32, #tpu.memory_space<vmem>>, %arg3: memref<2x128xf32, #tpu.memory_space<vmem>>, %arg4: memref<128x128xf32, #tpu.memory_space<vmem>>, %arg5: memref<1x1xf32, #tpu.memory_space<vmem>>, %arg6: memref<8x128xf32, #tpu.memory_space<vmem>>, %arg7: memref<8x18x128xf32, #tpu.memory_space<vmem>>) attributes {dimension_semantics = [#tpu.dimension_semantics<parallel>], iteration_bounds = array<i64: 2>, scalar_prefetch = 0 : i64, scratch_operands = 1 : i64, tpu.core_type = #tpu.core_type<tc>, window_params = [{transform_indices = @transform_0, window_bounds = array<i64: 8, 16, 24>}, {pipeline_mode = #tpu.pipeline_mode<synchronous>, transform_indices = @transform_1, window_bounds = array<i64: 408, 128>}, {pipeline_mode = #tpu.pipeline_mode<synchronous>, transform_indices = @transform_2, window_bounds = array<i64: 2, 128>}, {pipeline_mode = #tpu.pipeline_mode<synchronous>, transform_indices = @transform_3, window_bounds = array<i64: 128, 128>}, {pipeline_mode = #tpu.pipeline_mode<synchronous>, transform_indices = @transform_4, window_bounds = array<i64: 1, 1>}, {transform_indices = @transform_5, window_bounds = array<i64: 8, 128>}]} {
    %c0 = arith.constant 0 : index
    %c0_0 = arith.constant 0 : index
    %0 = vector.load %arg2[%c0, %c0_0] : memref<408x128xf32, #tpu.memory_space<vmem>>, vector<24x128xf32>
    %c0_1 = arith.constant 0 : index
    %c0_2 = arith.constant 0 : index
    %c0_3 = arith.constant 0 : index
    %1 = vector.load %arg1[%c0_1, %c0_2, %c0_3] : memref<8x16x24xf32, #tpu.memory_space<vmem>>, vector<8x16x24xf32>
    %cst = arith.constant dense<0.000000e+00> : vector<8x16x128xf32>
    %2 = tpu.matmul %1, %0, %cst {dimension_numbers = #tpu.dot_dimension_numbers<[2], [0], [0, 1], [1], [0, 0, 0, 1, 1, 1], [], []>} : vector<8x16x24xf32>, vector<24x128xf32>, vector<8x16x128xf32> -> vector<8x16x128xf32>
    %c0_4 = arith.constant 0 : index
    %c0_5 = arith.constant 0 : index
    %3 = vector.load %arg3[%c0_4, %c0_5] : memref<2x128xf32, #tpu.memory_space<vmem>>, vector<1x128xf32>
    %4 = vector.shape_cast %3 : vector<1x128xf32> to vector<1x1x128xf32>
    %5 = vector.broadcast %4 : vector<1x1x128xf32> to vector<8x16x128xf32>
    %6 = arith.addf %2, %5 : vector<8x16x128xf32>
    %cst_6 = arith.constant 0.000000e+00 : f32
    %7 = vector.broadcast %cst_6 : f32 to vector<8x16x128xf32>
    %8 = arith.maximumf %6, %7 : vector<8x16x128xf32>
    %cst_7 = arith.constant 0.000000e+00 : f32
    %9 = vector.broadcast %cst_7 : f32 to vector<8x1x128xf32>
    %c0_8 = arith.constant 0 : index
    %c0_9 = arith.constant 0 : index
    %c0_10 = arith.constant 0 : index
    %10 = vector.load %arg7[%c0_8, %c0_9, %c0_10] : memref<8x18x128xf32, #tpu.memory_space<vmem>>, vector<8x1x128xf32>
    tpu.vector_store %arg7[%c0_8, %c0_9, %c0_10], %9 {strides = array<i32>} : memref<8x18x128xf32, #tpu.memory_space<vmem>>, vector<8x1x128xf32>,
    %cst_11 = arith.constant 0.000000e+00 : f32
    %11 = vector.broadcast %cst_11 : f32 to vector<8x1x128xf32>
    %c0_12 = arith.constant 0 : index
    %c17 = arith.constant 17 : index
    %c0_13 = arith.constant 0 : index
    %12 = vector.load %arg7[%c0_12, %c17, %c0_13] : memref<8x18x128xf32, #tpu.memory_space<vmem>>, vector<8x1x128xf32>
    tpu.vector_store %arg7[%c0_12, %c17, %c0_13], %11 {strides = array<i32>} : memref<8x18x128xf32, #tpu.memory_space<vmem>>, vector<8x1x128xf32>,
    %c0_14 = arith.constant 0 : index
    %c1 = arith.constant 1 : index
    %c0_15 = arith.constant 0 : index
    %13 = vector.load %arg7[%c0_14, %c1, %c0_15] : memref<8x18x128xf32, #tpu.memory_space<vmem>>, vector<8x16x128xf32>
    tpu.vector_store %arg7[%c0_14, %c1, %c0_15], %8 {strides = array<i32>} : memref<8x18x128xf32, #tpu.memory_space<vmem>>, vector<8x16x128xf32>,
    %c24 = arith.constant 24 : index
    %c0_16 = arith.constant 0 : index
    %14 = vector.load %arg2[%c24, %c0_16] : memref<408x128xf32, #tpu.memory_space<vmem>>, vector<128x128xf32>
    %c0_17 = arith.constant 0 : index
    %c0_18 = arith.constant 0 : index
    %c0_19 = arith.constant 0 : index
    %15 = vector.load %arg7[%c0_17, %c0_18, %c0_19] : memref<8x18x128xf32, #tpu.memory_space<vmem>>, vector<8x16x128xf32>
    %cst_20 = arith.constant dense<0.000000e+00> : vector<8x16x128xf32>
    %16 = tpu.matmul %15, %14, %cst_20 {dimension_numbers = #tpu.dot_dimension_numbers<[2], [0], [0, 1], [1], [0, 0, 0, 1, 1, 1], [], []>} : vector<8x16x128xf32>, vector<128x128xf32>, vector<8x16x128xf32> -> vector<8x16x128xf32>
    %c152 = arith.constant 152 : index
    %c0_21 = arith.constant 0 : index
    %17 = vector.load %arg2[%c152, %c0_21] : memref<408x128xf32, #tpu.memory_space<vmem>>, vector<128x128xf32>
    %c0_22 = arith.constant 0 : index
    %c1_23 = arith.constant 1 : index
    %c0_24 = arith.constant 0 : index
    %18 = vector.load %arg7[%c0_22, %c1_23, %c0_24] : memref<8x18x128xf32, #tpu.memory_space<vmem>>, vector<8x16x128xf32>
    %cst_25 = arith.constant dense<0.000000e+00> : vector<8x16x128xf32>
    %19 = tpu.matmul %18, %17, %cst_25 {dimension_numbers = #tpu.dot_dimension_numbers<[2], [0], [0, 1], [1], [0, 0, 0, 1, 1, 1], [], []>} : vector<8x16x128xf32>, vector<128x128xf32>, vector<8x16x128xf32> -> vector<8x16x128xf32>
    %20 = arith.addf %16, %19 : vector<8x16x128xf32>
    %c280 = arith.constant 280 : index
    %c0_26 = arith.constant 0 : index
    %21 = vector.load %arg2[%c280, %c0_26] : memref<408x128xf32, #tpu.memory_space<vmem>>, vector<128x128xf32>
    %c0_27 = arith.constant 0 : index
    %c2 = arith.constant 2 : index
    %c0_28 = arith.constant 0 : index
    %22 = vector.load %arg7[%c0_27, %c2, %c0_28] : memref<8x18x128xf32, #tpu.memory_space<vmem>>, vector<8x16x128xf32>
    %cst_29 = arith.constant dense<0.000000e+00> : vector<8x16x128xf32>
    %23 = tpu.matmul %22, %21, %cst_29 {dimension_numbers = #tpu.dot_dimension_numbers<[2], [0], [0, 1], [1], [0, 0, 0, 1, 1, 1], [], []>} : vector<8x16x128xf32>, vector<128x128xf32>, vector<8x16x128xf32> -> vector<8x16x128xf32>
    %24 = arith.addf %20, %23 : vector<8x16x128xf32>
    %c1_30 = arith.constant 1 : index
    %c0_31 = arith.constant 0 : index
    %25 = vector.load %arg3[%c1_30, %c0_31] : memref<2x128xf32, #tpu.memory_space<vmem>>, vector<1x128xf32>
    %26 = vector.shape_cast %25 : vector<1x128xf32> to vector<1x1x128xf32>
    %27 = vector.broadcast %26 : vector<1x1x128xf32> to vector<8x16x128xf32>
    %28 = arith.addf %24, %27 : vector<8x16x128xf32>
    %cst_32 = arith.constant 0.000000e+00 : f32
    %29 = vector.broadcast %cst_32 : f32 to vector<8x16x128xf32>
    %30 = arith.maximumf %28, %29 : vector<8x16x128xf32>
    %cst_33 = arith.constant dense<0.000000e+00> : vector<8x128xf32>
    %31 = vector.multi_reduction <add>, %30, %cst_33 [1] : vector<8x16x128xf32> to vector<8x128xf32>
    %cst_34 = arith.constant 6.250000e-02 : f32
    %32 = vector.broadcast %cst_34 : f32 to vector<8x128xf32>
    %33 = arith.mulf %31, %32 : vector<8x128xf32>
    %c0_35 = arith.constant 0 : index
    %c0_36 = arith.constant 0 : index
    %34 = vector.load %arg4[%c0_35, %c0_36] : memref<128x128xf32, #tpu.memory_space<vmem>>, vector<128x128xf32>
    %cst_37 = arith.constant dense<0.000000e+00> : vector<8x128xf32>
    %35 = tpu.matmul %33, %34, %cst_37 {dimension_numbers = #tpu.dot_dimension_numbers<[1], [0], [0], [1], [0, 0, 1, 1], [], []>} : vector<8x128xf32>, vector<128x128xf32>, vector<8x128xf32> -> vector<8x128xf32>
    %c0_38 = arith.constant 0 : index
    %c0_39 = arith.constant 0 : index
    %36 = vector.load %arg5[%c0_38, %c0_39] : memref<1x1xf32, #tpu.memory_space<vmem>>, vector<1x1xf32>
    %37 = vector.broadcast %36 : vector<1x1xf32> to vector<8x128xf32>
    %38 = arith.addf %35, %37 : vector<8x128xf32>
    %c0_40 = arith.constant 0 : index
    %c0_41 = arith.constant 0 : index
    %39 = vector.load %arg6[%c0_40, %c0_41] : memref<8x128xf32, #tpu.memory_space<vmem>>, vector<8x128xf32>
    tpu.vector_store %arg6[%c0_40, %c0_41], %38 {strides = array<i32>} : memref<8x128xf32, #tpu.memory_space<vmem>>, vector<8x128xf32>,
    return
  }
  func.func @transform_0(%arg0: i32) -> (i32, i32, i32) {
    %c0_i32 = arith.constant 0 : i32
    %c0_i32_0 = arith.constant 0 : i32
    %c0_i32_1 = arith.constant 0 : i32
    return %arg0, %c0_i32, %c0_i32_0 : i32, i32, i32
  }
  func.func @transform_1(%arg0: i32) -> (i32, i32) {
    %c0_i32 = arith.constant 0 : i32
    %c0_i32_0 = arith.constant 0 : i32
    %c0_i32_1 = arith.constant 0 : i32
    return %c0_i32, %c0_i32_0 : i32, i32
  }
  func.func @transform_2(%arg0: i32) -> (i32, i32) {
    %c0_i32 = arith.constant 0 : i32
    %c0_i32_0 = arith.constant 0 : i32
    %c0_i32_1 = arith.constant 0 : i32
    return %c0_i32, %c0_i32_0 : i32, i32
  }
  func.func @transform_3(%arg0: i32) -> (i32, i32) {
    %c0_i32 = arith.constant 0 : i32
    %c0_i32_0 = arith.constant 0 : i32
    %c0_i32_1 = arith.constant 0 : i32
    return %c0_i32, %c0_i32_0 : i32, i32
  }
  func.func @transform_4(%arg0: i32) -> (i32, i32) {
    %c0_i32 = arith.constant 0 : i32
    %c0_i32_0 = arith.constant 0 : i32
    %c0_i32_1 = arith.constant 0 : i32
    return %c0_i32, %c0_i32_0 : i32, i32
  }
  func.func @transform_5(%arg0: i32) -> (i32, i32) {
    %c0_i32 = arith.constant 0 : i32
    %c0_i32_0 = arith.constant 0 : i32
    return %arg0, %c0_i32 : i32, i32
  }
}

</mosaic_0001>

<llo_original>
// kernel: tpu_custom_call.1
$region0: #{tpu_custom_call.1}
  #allocation0 [shape = 'u32[]', space=smem, size = 0x4, offset = 0x4, fixed_abs, tag = 'smem constant byte address 0x4 - core index']
  #allocation1 [shape = 'u32[72,128]{1,0:T(1,128)}', space=vmem, size = 0x9000, scoped, tag = 'internal scratch']
  #allocation2 [shape = 'f32[8,18,128]{2,1,0:T(8,128)}', space=vmem, size = 0x18000, scoped, tag = 'scratch operand']
  #allocation3 [shape = 'f32[1,1]{1,0:T(1,128)S(1)}', space=vmem, size = 0x200, scoped, tag = 'scoped memory for tpu_custom_call.1']
  %s0 = inlined_call_operand.hbm [shape: f32[16,16,24], index: 0, kind: input, shape index: {}]
  %s1 = inlined_call_operand.hbm [shape: f32[408,128], index: 1, kind: input, shape index: {}]
  %s2 = inlined_call_operand.vmem [shape: f32[2,128], index: 2, kind: input, shape index: {}]
  %s3 = inlined_call_operand.hbm [shape: f32[128,128], index: 3, kind: input, shape index: {}]
  %s4 = inlined_call_operand.<no memory space> [shape: f32[1,1], index: 4, kind: input, shape index: {}]
  %s5 = inlined_call_operand.hbm [shape: f32[16,128], index: 5, kind: output, shape index: {}]
  %s6 = sld [smem:[#allocation0]]
  $region65: #{tpu_custom_call.1} parent=0
    _
  %s8 = ssub.s32 1, %s6
  %s9 = scalar_select 0, %s8, %s6
  %v10 = vstv %s4
  %11 = vst [vmem:[#allocation3] sm:$0x1] %v10
  $region1: #{tpu_custom_call.1} parent=0
    #allocation4 [shape = 'u8[131072]{0}', space=vmem, size = 0x20000, scoped, tag = 'input window, operand 0']
    #allocation5 [shape = 's32[2]{0}', space=sflag, size = 0x8, scoped, tag = 'scoped memory for tpu_custom_call.1']
    #allocation6 [shape = 's32[2]{0}', space=sflag, size = 0x8, scoped, tag = 'scoped memory for tpu_custom_call.1']
    #allocation7 [shape = 'u8[208896]{0}', space=vmem, size = 0x33000, scoped, tag = 'input window, operand 1, single buffered']
    #allocation8 [shape = 's32[1]{0}', space=sflag, size = 0x4, scoped, tag = 'scoped memory for tpu_custom_call.1']
    #allocation9 [shape = 'u8[65536]{0}', space=vmem, size = 0x10000, scoped, tag = 'input window, operand 3, single buffered']
    #allocation10 [shape = 'u8[8192]{0}', space=vmem, size = 0x2000, scoped, tag = 'output window, operand 0']
    %12 = vsyncpa [#allocation5], 0
    %s13 = scalar_lea.sflag [#allocation5], 1
    %14 = vsyncpa %s13, 0
    %15 = vsyncpa [#allocation8], 0
    %16 = vsyncpa [#allocation6], 0
    %s17 = scalar_lea.sflag [#allocation6], 1
    %18 = vsyncpa %s17, 0
    loop: start=0, step=1, limit=4
    $region2: #{tpu_custom_call.1} parent=1 // loop_pre_header
      _
    $region3: #{tpu_custom_call.1} parent=1 // loop_header
      %s20 = sphi 0, %s24
      %p21 = scmp.ge.s32.totalorder %s20, 4
      %s30 = sphi 0, %s32
      %s33 = sphi 0, %s30
      %s34 = sphi 0, %s33
      %s50 = sphi 0, %s34
      %s54 = sphi 0, %s54
      %s56 = sphi 0, %s54
      %s57 = sphi 0, %s56
      %s71 = sphi 0, %s57
      %s75 = sphi 0, %s75
      %s77 = sphi 0, %s75
      %s78 = sphi 0, %s77
      %s92 = sphi 0, %s78
      %s96 = sphi 0, %s96
      %s98 = sphi 0, %s96
      %s99 = sphi 0, %s98
      %s113 = sphi 0, %s99
      %s117 = sphi 0, %s117
      %s119 = sphi 0, %s117
      %s120 = sphi 0, %s119
      %s134 = sphi 0, %s120
      %s140 = sphi 0, %s142
      %s143 = sphi 0, %s140
      %s144 = sphi 0, %s143
      %s160 = sphi 0, %s144
    $region4: #{tpu_custom_call.1} parent=1 // loop_header_branch
      %23 = sbr.rel (%p21) target = $region8
    $region5: #{tpu_custom_call.1} parent=1 // loop_body
      %s25 = ssub.s32 %s20, 1
      %s26 = ssub.s32 %s20, 2
      %s27 = sadd.s32 %s20, 1
      %s28 = ssub.s32 %s20, %s27
      %p29 = scmp.eq.s32.totalorder %s28, 0
      %s31 = sadd.s32 %s30, 1
      %s32 = scalar_select %p29, %s30, %s31
      %p35 = pneg %p29
      %p36 = scmp.eq.s32.totalorder %s20, 1
      %p37 = por %p35, %p36
      %p38 = scmp.ne.s32.totalorder %s30, %s33
      %p39 = scmp.eq.s32.totalorder %s20, 0
      %p40 = por %p38, %p39
      %p41 = scmp.ne.s32.totalorder %s30, %s33
      %p42 = scmp.eq.s32.totalorder %s25, 1
      %p43 = por %p41, %p42
      %p44 = scmp.ne.s32.totalorder %s33, %s34
      %p45 = scmp.eq.s32.totalorder %s25, 0
      %p46 = por %p44, %p45
      %p47 = scmp.ne.s32.totalorder %s33, %s34
      %p48 = scmp.eq.s32.totalorder %s26, 1
      %p49 = por %p47, %p48
      %p51 = scmp.ne.s32.totalorder %s34, %s50
      %p52 = scmp.eq.s32.totalorder %s26, 0
      %p53 = por %p51, %p52
      %s55 = sadd.s32 %s54, 1
      %p58 = scmp.eq.s32.totalorder %s20, 1
      %p59 = scmp.ne.s32.totalorder %s54, %s56
      %p60 = scmp.eq.s32.totalorder %s20, 0
      %p61 = por %p59, %p60
      %p62 = scmp.ne.s32.totalorder %s54, %s56
      %p63 = scmp.eq.s32.totalorder %s25, 1
      %p64 = por %p62, %p63
      %p65 = scmp.ne.s32.totalorder %s56, %s57
      %p66 = scmp.eq.s32.totalorder %s25, 0
      %p67 = por %p65, %p66
      %p68 = scmp.ne.s32.totalorder %s56, %s57
      %p69 = scmp.eq.s32.totalorder %s26, 1
      %p70 = por %p68, %p69
      %p72 = scmp.ne.s32.totalorder %s57, %s71
      %p73 = scmp.eq.s32.totalorder %s26, 0
      %p74 = por %p72, %p73
      %s76 = sadd.s32 %s75, 1
      %p79 = scmp.eq.s32.totalorder %s20, 1
      %p80 = scmp.ne.s32.totalorder %s75, %s77
      %p81 = scmp.eq.s32.totalorder %s20, 0
      %p82 = por %p80, %p81
      %p83 = scmp.ne.s32.totalorder %s75, %s77
      %p84 = scmp.eq.s32.totalorder %s25, 1
      %p85 = por %p83, %p84
      %p86 = scmp.ne.s32.totalorder %s77, %s78
      %p87 = scmp.eq.s32.totalorder %s25, 0
      %p88 = por %p86, %p87
      %p89 = scmp.ne.s32.totalorder %s77, %s78
      %p90 = scmp.eq.s32.totalorder %s26, 1
      %p91 = por %p89, %p90
      %p93 = scmp.ne.s32.totalorder %s78, %s92
      %p94 = scmp.eq.s32.totalorder %s26, 0
      %p95 = por %p93, %p94
      %s97 = sadd.s32 %s96, 1
      %p100 = scmp.eq.s32.totalorder %s20, 1
      %p101 = scmp.ne.s32.totalorder %s96, %s98
      %p102 = scmp.eq.s32.totalorder %s20, 0
      %p103 = por %p101, %p102
      %p104 = scmp.ne.s32.totalorder %s96, %s98
      %p105 = scmp.eq.s32.totalorder %s25, 1
      %p106 = por %p104, %p105
      %p107 = scmp.ne.s32.totalorder %s98, %s99
      %p108 = scmp.eq.s32.totalorder %s25, 0
      %p109 = por %p107, %p108
      %p110 = scmp.ne.s32.totalorder %s98, %s99
      %p111 = scmp.eq.s32.totalorder %s26, 1
      %p112 = por %p110, %p111
      %p114 = scmp.ne.s32.totalorder %s99, %s113
      %p115 = scmp.eq.s32.totalorder %s26, 0
      %p116 = por %p114, %p115
      %s118 = sadd.s32 %s117, 1
      %p121 = scmp.eq.s32.totalorder %s20, 1
      %p122 = scmp.ne.s32.totalorder %s117, %s119
      %p123 = scmp.eq.s32.totalorder %s20, 0
      %p124 = por %p122, %p123
      %p125 = scmp.ne.s32.totalorder %s117, %s119
      %p126 = scmp.eq.s32.totalorder %s25, 1
      %p127 = por %p125, %p126
      %p128 = scmp.ne.s32.totalorder %s119, %s120
      %p129 = scmp.eq.s32.totalorder %s25, 0
      %p130 = por %p128, %p129
      %p131 = scmp.ne.s32.totalorder %s119, %s120
      %p132 = scmp.eq.s32.totalorder %s26, 1
      %p133 = por %p131, %p132
      %p135 = scmp.ne.s32.totalorder %s120, %s134
      %p136 = scmp.eq.s32.totalorder %s26, 0
      %p137 = por %p135, %p136
      %s138 = ssub.s32 %s20, %s27
      %p139 = scmp.eq.s32.totalorder %s138, 0
      %s141 = sadd.s32 %s140, 1
      %s142 = scalar_select %p139, %s140, %s141
      %p145 = pneg %p139
      %p146 = scmp.eq.s32.totalorder %s20, 1
      %p147 = por %p145, %p146
      %p148 = scmp.ne.s32.totalorder %s140, %s143
      %p149 = scmp.eq.s32.totalorder %s20, 0
      %p150 = por %p148, %p149
      %p151 = scmp.ne.s32.totalorder %s140, %s143
      %p152 = scmp.eq.s32.totalorder %s25, 1
      %p153 = por %p151, %p152
      %p154 = scmp.ne.s32.totalorder %s143, %s144
      %p155 = scmp.eq.s32.totalorder %s25, 0
      %p156 = por %p154, %p155
      %p157 = scmp.ne.s32.totalorder %s143, %s144
      %p158 = scmp.eq.s32.totalorder %s26, 1
      %p159 = por %p157, %p158
      %p161 = scmp.ne.s32.totalorder %s144, %s160
      %p162 = scmp.eq.s32.totalorder %s26, 0
      %p163 = por %p161, %p162
      %p164 = scmp.le.s32.totalorder 1, %s20
      %p165 = scmp.lt.s32.totalorder %s20, 3
      %p166 = pnand %p164, %p165
      %p167 = pneg %p166
      // Predicated region
      $region9: #{tpu_custom_call.1} parent=5 // pred_check
        _
      $region10: #{tpu_custom_call.1} parent=5 // pred_check_branch
        %169 = sbr.rel (%p166) target = $region12
      $region11: #{tpu_custom_call.1} parent=5 // pred_region
        %s170 = ssub.s32 %s20, 1
        // Predicated region
        $region13: #{tpu_custom_call.1} parent=11 // pred_check
          %p171 = pneg %p67
        $region14: #{tpu_custom_call.1} parent=11 // pred_check_branch
          %173 = sbr.rel (%p171) target = $region16
        $region15: #{tpu_custom_call.1} parent=11 // pred_region
          %175 = vsyncadd [#allocation8], 0
          %s176 = sshll.u32 %s1, 4
          %s177 = int_to_ptr.hbm [resolvable:$true] %s176
          %s178 = sshll.u32 [#allocation7], 4
          %s179 = int_to_ptr.vmem [resolvable:$true] %s178
          %184 = dma.hbm_to_vmem [thread:$0]  %s177, 6528, %s179, [#allocation8], 128, 128, 8
        $region16: #{tpu_custom_call.1} parent=11 // pred_fallthru
          _
        // Predicated region
        $region17: #{tpu_custom_call.1} parent=11 // pred_check
          %p185 = pneg %p88
        $region18: #{tpu_custom_call.1} parent=11 // pred_check_branch
          %187 = sbr.rel (%p185) target = $region20
        $region19: #{tpu_custom_call.1} parent=11 // pred_region
          _
        $region20: #{tpu_custom_call.1} parent=11 // pred_fallthru
          _
        // Predicated region
        $region21: #{tpu_custom_call.1} parent=11 // pred_check
          %p188 = pneg %p109
        $region22: #{tpu_custom_call.1} parent=11 // pred_check_branch
          %190 = sbr.rel (%p188) target = $region24
        $region23: #{tpu_custom_call.1} parent=11 // pred_region
          %192 = vsyncadd [#allocation8], 0
          %s193 = sshll.u32 %s3, 4
          %s194 = int_to_ptr.hbm [resolvable:$true] %s193
          %s195 = sshll.u32 [#allocation9], 4
          %s196 = int_to_ptr.vmem [resolvable:$true] %s195
          %201 = dma.hbm_to_vmem [thread:$0]  %s194, 2048, %s196, [#allocation8], 128, 128, 8
        $region24: #{tpu_custom_call.1} parent=11 // pred_fallthru
          _
        // Predicated region
        $region25: #{tpu_custom_call.1} parent=11 // pred_check
          %p202 = pneg %p130
        $region26: #{tpu_custom_call.1} parent=11 // pred_check_branch
          %204 = sbr.rel (%p202) target = $region28
        $region27: #{tpu_custom_call.1} parent=11 // pred_region
          _
        $region28: #{tpu_custom_call.1} parent=11 // pred_fallthru
          _
      $region12: #{tpu_custom_call.1} parent=5 // pred_fallthru
        _
      %p205 = scmp.lt.s32.totalorder %s20, 2
      // Predicated region
      $region29: #{tpu_custom_call.1} parent=5 // pred_check
        %p206 = pneg %p205
      $region30: #{tpu_custom_call.1} parent=5 // pred_check_branch
        %208 = sbr.rel (%p206) target = $region32
      $region31: #{tpu_custom_call.1} parent=5 // pred_region
        // Predicated region
        $region33: #{tpu_custom_call.1} parent=31 // pred_check
          %p209 = pneg %p40
        $region34: #{tpu_custom_call.1} parent=31 // pred_check_branch
          %211 = sbr.rel (%p209) target = $region36
        $region35: #{tpu_custom_call.1} parent=31 // pred_region
          %s212 = sand.u32 %s30, 1
          %s213 = scalar_lea.sflag [#allocation5], %s212
          %s214 = sand.u32 %s30, 1
          %s215 = smul.addr %s214, 128
          %s216 = scalar_lea.vmem [#allocation4], %s215
          %s217 = smul.u32 8, %s20
          %219 = vsyncadd %s213, 0
          %s220 = smul.addr %s217, 2
          %s221 = smul.addr %s220, 8
          %s222 = scalar_lea.hbm %s0, %s221
          %s223 = sshll.u32 %s222, 4
          %s224 = int_to_ptr.hbm [resolvable:$true] %s223
          %s225 = sshll.u32 %s216, 4
          %s226 = int_to_ptr.vmem [resolvable:$true] %s225
          %231 = dma.hbm_to_vmem [thread:$0]  %s224, 2048, %s226, %s213, 128, 128, 8
        $region36: #{tpu_custom_call.1} parent=31 // pred_fallthru
          _
      $region32: #{tpu_custom_call.1} parent=5 // pred_fallthru
        _
      %p232 = scmp.le.s32.totalorder 1, %s20
      %p233 = scmp.lt.s32.totalorder %s20, 3
      %p234 = pnand %p232, %p233
      %p235 = pneg %p234
      // Predicated region
      $region37: #{tpu_custom_call.1} parent=5 // pred_check
        _
      $region38: #{tpu_custom_call.1} parent=5 // pred_check_branch
        %237 = sbr.rel (%p234) target = $region40
      $region39: #{tpu_custom_call.1} parent=5 // pred_region
        %s238 = ssub.s32 %s20, 1
        %s239 = sand.u32 %s33, 1
        %s240 = scalar_lea.sflag [#allocation5], %s239
        %s241 = sand.u32 %s33, 1
        %s242 = smul.addr %s241, 128
        %s243 = scalar_lea.vmem [#allocation4], %s242
        // Predicated region
        $region41: #{tpu_custom_call.1} parent=39 // pred_check
          %p244 = pneg %p46
        $region42: #{tpu_custom_call.1} parent=39 // pred_check_branch
          %246 = sbr.rel (%p244) target = $region44
        $region43: #{tpu_custom_call.1} parent=39 // pred_region
          %248 = dma.done %s240, 2048
        $region44: #{tpu_custom_call.1} parent=39 // pred_fallthru
          _
        // Predicated region
        $region45: #{tpu_custom_call.1} parent=39 // pred_check
          %p249 = pneg %p67
        $region46: #{tpu_custom_call.1} parent=39 // pred_check_branch
          %251 = sbr.rel (%p249) target = $region48
        $region47: #{tpu_custom_call.1} parent=39 // pred_region
          %253 = dma.done [#allocation8], 6528
        $region48: #{tpu_custom_call.1} parent=39 // pred_fallthru
          _
        // Predicated region
        $region49: #{tpu_custom_call.1} parent=39 // pred_check
          %p254 = pneg %p109
        $region50: #{tpu_custom_call.1} parent=39 // pred_check_branch
          %256 = sbr.rel (%p254) target = $region52
        $region51: #{tpu_custom_call.1} parent=39 // pred_region
          %258 = dma.done [#allocation8], 2048
        $region52: #{tpu_custom_call.1} parent=39 // pred_fallthru
          _
        %s259 = sand.u32 %s33, 1
        %s260 = scalar_lea.sflag [#allocation5], %s259
        %s261 = sand.u32 %s33, 1
        %s262 = smul.addr %s261, 128
        %s263 = scalar_lea.vmem [#allocation4], %s262
        %p264 = pneg %p46
        %p265 = pneg %p43
        %p266 = pneg %p67
        %p267 = pneg %p64
        %p268 = pneg %p88
        %p269 = pneg %p85
        %p270 = pneg %p109
        %p271 = pneg %p106
        %p272 = pneg %p130
        %p273 = pneg %p127
        %p274 = pneg %p156
        %p275 = pneg %p153
        %s276 = sand.u32 %s143, 1
        %s277 = scalar_lea.sflag [#allocation6], %s276
        %s278 = sand.u32 %s143, 1
        %s279 = smul.addr %s278, 8
        %s280 = scalar_lea.vmem [#allocation10], %s279
        %s281 = smul.u32 8, %s25
        %v282 = vld [vmem:[#allocation7] sm:$0xff]
        %v283 = vld [vmem:[#allocation7 + $0x8] sm:$0xff]
        %v284 = vld [vmem:[#allocation7 + $0x10] sm:$0xff]
        %v285 = vld [vmem:[%s243] sm:$0xff]
        %v286 = vld [vmem:[%s243 + $0x8] sm:$0xff]
        %v287 = vld [vmem:[%s243 + $0x10] sm:$0xff]
        %v288 = vld [vmem:[%s243 + $0x18] sm:$0xff]
        %v289 = vld [vmem:[%s243 + $0x20] sm:$0xff]
        %v290 = vld [vmem:[%s243 + $0x28] sm:$0xff]
        %v291 = vld [vmem:[%s243 + $0x30] sm:$0xff]
        %v292 = vld [vmem:[%s243 + $0x38] sm:$0xff]
        %v293 = vld [vmem:[%s243 + $0x40] sm:$0xff]
        %v294 = vld [vmem:[%s243 + $0x48] sm:$0xff]
        %v295 = vld [vmem:[%s243 + $0x50] sm:$0xff]
        %v296 = vld [vmem:[%s243 + $0x58] sm:$0xff]
        %v297 = vld [vmem:[%s243 + $0x60] sm:$0xff]
        %v298 = vld [vmem:[%s243 + $0x68] sm:$0xff]
        %v299 = vld [vmem:[%s243 + $0x70] sm:$0xff]
        %v300 = vld [vmem:[%s243 + $0x78] sm:$0xff]
        %v301 = vld [vmem:[%s2] sm:$0x1]
        %v302 = vperm.slane %v301, 0
        %vm303 = vcmask 195584
        %v305 = vsel %vm303, %v285, 0
        %v308 = vsel %vm303, %v286, 0
        %v311 = vsel %vm303, %v287, 0
        %v314 = vsel %vm303, %v288, 0
        %v317 = vsel %vm303, %v289, 0
        %v320 = vsel %vm303, %v290, 0
        %v323 = vsel %vm303, %v291, 0
        %v326 = vsel %vm303, %v292, 0
        %v329 = vsel %vm303, %v293, 0
        %v332 = vsel %vm303, %v294, 0
        %v335 = vsel %vm303, %v295, 0
        %v338 = vsel %vm303, %v296, 0
        %v341 = vsel %vm303, %v297, 0
        %v344 = vsel %vm303, %v298, 0
        %v347 = vsel %vm303, %v299, 0
        %v350 = vsel %vm303, %v300, 0
        %352 = vmatpush.msra.mxu0 0.0
        %353 = vmatpush.msra.mxu0 0.0
        %354 = vmatpush.msra.mxu0 0.0
        %355 = vmatpush.msra.mxu0 0.0
        %356 = vmatpush.msra.mxu0 0.0
        %357 = vmatpush.msra.mxu0 0.0
        %358 = vmatpush.msra.mxu0 0.0
        %359 = vmatpush.msra.mxu0 0.0
        %360 = vmatpush.msra.mxu0 0.0
        %361 = vmatpush.msra.mxu0 0.0
        %362 = vmatpush.msra.mxu0 0.0
        %363 = vmatpush.msra.mxu0 0.0
        %364 = vmatpush.msra.mxu0 0.0
        %365 = vmatpush.msra.mxu0 %v284
        %366 = vmatpush.msra.mxu0 %v283
        %367 = vmatpush.msra.mxu0 %v282
        %368 = vmatmul.f32.gmra.mxu0 %v305
        %v369 = vpop.f32.mrf.mxu0
        %v370 = vadd.f32 %v302, %v369
        %371 = vmatmul.f32.gmra.mxu0 %v308
        %v372 = vpop.f32.mrf.mxu0
        %v373 = vadd.f32 %v302, %v372
        %374 = vmatmul.f32.gmra.mxu0 %v311
        %v375 = vpop.f32.mrf.mxu0
        %v376 = vadd.f32 %v302, %v375
        %377 = vmatmul.f32.gmra.mxu0 %v314
        %v378 = vpop.f32.mrf.mxu0
        %v379 = vadd.f32 %v302, %v378
        %380 = vmatmul.f32.gmra.mxu0 %v317
        %v381 = vpop.f32.mrf.mxu0
        %v382 = vadd.f32 %v302, %v381
        %383 = vmatmul.f32.gmra.mxu0 %v320
        %v384 = vpop.f32.mrf.mxu0
        %v385 = vadd.f32 %v302, %v384
        %386 = vmatmul.f32.gmra.mxu0 %v323
        %v387 = vpop.f32.mrf.mxu0
        %v388 = vadd.f32 %v302, %v387
        %389 = vmatmul.f32.gmra.mxu0 %v326
        %v390 = vpop.f32.mrf.mxu0
        %v391 = vadd.f32 %v302, %v390
        %392 = vmatmul.f32.gmra.mxu0 %v329
        %v393 = vpop.f32.mrf.mxu0
        %v394 = vadd.f32 %v302, %v393
        %395 = vmatmul.f32.gmra.mxu0 %v332
        %v396 = vpop.f32.mrf.mxu0
        %v397 = vadd.f32 %v302, %v396
        %398 = vmatmul.f32.gmra.mxu0 %v335
        %v399 = vpop.f32.mrf.mxu0
        %v400 = vadd.f32 %v302, %v399
        %401 = vmatmul.f32.gmra.mxu0 %v338
        %v402 = vpop.f32.mrf.mxu0
        %v403 = vadd.f32 %v302, %v402
        %404 = vmatmul.f32.gmra.mxu0 %v341
        %v405 = vpop.f32.mrf.mxu0
        %v406 = vadd.f32 %v302, %v405
        %407 = vmatmul.f32.gmra.mxu0 %v344
        %v408 = vpop.f32.mrf.mxu0
        %v409 = vadd.f32 %v302, %v408
        %410 = vmatmul.f32.gmra.mxu0 %v347
        %v411 = vpop.f32.mrf.mxu0
        %v412 = vadd.f32 %v302, %v411
        %413 = vmatmul.f32.gmra.mxu0 %v350
        %v414 = vpop.f32.mrf.mxu0
        %v415 = vadd.f32 %v302, %v414
        %416 = vdwg.mxu0
        %v417 = vmax.f32 %v370, 0.0
        %v418 = vmax.f32 %v373, 0.0
        %v419 = vmax.f32 %v376, 0.0
        %v420 = vmax.f32 %v379, 0.0
        %v421 = vmax.f32 %v382, 0.0
        %v422 = vmax.f32 %v385, 0.0
        %v423 = vmax.f32 %v388, 0.0
        %v424 = vmax.f32 %v391, 0.0
        %v425 = vmax.f32 %v394, 0.0
        %v426 = vmax.f32 %v397, 0.0
        %v427 = vmax.f32 %v400, 0.0
        %v428 = vmax.f32 %v403, 0.0
        %v429 = vmax.f32 %v406, 0.0
        %v430 = vmax.f32 %v409, 0.0
        %v431 = vmax.f32 %v412, 0.0
        %v432 = vmax.f32 %v415, 0.0
        %433 = vst [vmem:[#allocation2] sm:$0x1] 0.0
        %434 = vst [vmem:[#allocation2 + $0x18] sm:$0x1] 0.0
        %435 = vst [vmem:[#allocation2 + $0x30] sm:$0x1] 0.0
        %436 = vst [vmem:[#allocation2 + $0x48] sm:$0x1] 0.0
        %437 = vst [vmem:[#allocation2 + $0x60] sm:$0x1] 0.0
        %438 = vst [vmem:[#allocation2 + $0x78] sm:$0x1] 0.0
        %439 = vst [vmem:[#allocation2 + $0x90] sm:$0x1] 0.0
        %440 = vst [vmem:[#allocation2 + $0xa8] sm:$0x1] 0.0
        %441 = vst [vmem:[#allocation2 + $0x11] sm:$0x1] 0.0
        %442 = vst [vmem:[#allocation2 + $0x29] sm:$0x1] 0.0
        %443 = vst [vmem:[#allocation2 + $0x41] sm:$0x1] 0.0
        %444 = vst [vmem:[#allocation2 + $0x59] sm:$0x1] 0.0
        %445 = vst [vmem:[#allocation2 + $0x71] sm:$0x1] 0.0
        %446 = vst [vmem:[#allocation2 + $0x89] sm:$0x1] 0.0
        %447 = vst [vmem:[#allocation2 + $0xa1] sm:$0x1] 0.0
        %448 = vst [vmem:[#allocation2 + $0xb9] sm:$0x1] 0.0
        %449 = vst [vmem:[#allocation2 + $0x1] sm:$0xff] %v417
        %450 = vst [vmem:[#allocation2 + $0x9] sm:$0xff] %v418
        %451 = vst [vmem:[#allocation2 + $0x19] sm:$0xff] %v419
        %452 = vst [vmem:[#allocation2 + $0x21] sm:$0xff] %v420
        %453 = vst [vmem:[#allocation2 + $0x31] sm:$0xff] %v421
        %454 = vst [vmem:[#allocation2 + $0x39] sm:$0xff] %v422
        %455 = vst [vmem:[#allocation2 + $0x49] sm:$0xff] %v423
        %456 = vst [vmem:[#allocation2 + $0x51] sm:$0xff] %v424
        %457 = vst [vmem:[#allocation2 + $0x61] sm:$0xff] %v425
        %458 = vst [vmem:[#allocation2 + $0x69] sm:$0xff] %v426
        %459 = vst [vmem:[#allocation2 + $0x79] sm:$0xff] %v427
        %460 = vst [vmem:[#allocation2 + $0x81] sm:$0xff] %v428
        %461 = vst [vmem:[#allocation2 + $0x91] sm:$0xff] %v429
        %462 = vst [vmem:[#allocation2 + $0x99] sm:$0xff] %v430
        %463 = vst [vmem:[#allocation2 + $0xa9] sm:$0xff] %v431
        %464 = vst [vmem:[#allocation2 + $0xb1] sm:$0xff] %v432
        %v465 = vld [vmem:[#allocation7 + $0x18] sm:$0xff]
        %v466 = vld [vmem:[#allocation7 + $0x20] sm:$0xff]
        %v467 = vld [vmem:[#allocation7 + $0x28] sm:$0xff]
        %v468 = vld [vmem:[#allocation7 + $0x30] sm:$0xff]
        %v469 = vld [vmem:[#allocation7 + $0x38] sm:$0xff]
        %v470 = vld [vmem:[#allocation7 + $0x40] sm:$0xff]
        %v471 = vld [vmem:[#allocation7 + $0x48] sm:$0xff]
        %v472 = vld [vmem:[#allocation7 + $0x50] sm:$0xff]
        %v473 = vld [vmem:[#allocation7 + $0x58] sm:$0xff]
        %v474 = vld [vmem:[#allocation7 + $0x60] sm:$0xff]
        %v475 = vld [vmem:[#allocation7 + $0x68] sm:$0xff]
        %v476 = vld [vmem:[#allocation7 + $0x70] sm:$0xff]
        %v477 = vld [vmem:[#allocation7 + $0x78] sm:$0xff]
        %v478 = vld [vmem:[#allocation7 + $0x80] sm:$0xff]
        %v479 = vld [vmem:[#allocation7 + $0x88] sm:$0xff]
        %v480 = vld [vmem:[#allocation7 + $0x90] sm:$0xff]
        %v481 = vld [vmem:[#allocation2] sm:$0xff]
        %v482 = vld [vmem:[#allocation2 + $0x8] sm:$0xff]
        %v483 = vld [vmem:[#allocation2 + $0x18] sm:$0xff]
        %v484 = vld [vmem:[#allocation2 + $0x20] sm:$0xff]
        %v485 = vld [vmem:[#allocation2 + $0x30] sm:$0xff]
        %v486 = vld [vmem:[#allocation2 + $0x38] sm:$0xff]
        %v487 = vld [vmem:[#allocation2 + $0x48] sm:$0xff]
        %v488 = vld [vmem:[#allocation2 + $0x50] sm:$0xff]
        %v489 = vld [vmem:[#allocation2 + $0x60] sm:$0xff]
        %v490 = vld [vmem:[#allocation2 + $0x68] sm:$0xff]
        %v491 = vld [vmem:[#allocation2 + $0x78] sm:$0xff]
        %v492 = vld [vmem:[#allocation2 + $0x80] sm:$0xff]
        %v493 = vld [vmem:[#allocation2 + $0x90] sm:$0xff]
        %v494 = vld [vmem:[#allocation2 + $0x98] sm:$0xff]
        %v495 = vld [vmem:[#allocation2 + $0xa8] sm:$0xff]
        %v496 = vld [vmem:[#allocation2 + $0xb0] sm:$0xff]
        %v497 = vld [vmem:[#allocation7 + $0x98] sm:$0xff]
        %v498 = vld [vmem:[#allocation7 + $0xa0] sm:$0xff]
        %v499 = vld [vmem:[#allocation7 + $0xa8] sm:$0xff]
        %v500 = vld [vmem:[#allocation7 + $0xb0] sm:$0xff]
        %v501 = vld [vmem:[#allocation7 + $0xb8] sm:$0xff]
        %v502 = vld [vmem:[#allocation7 + $0xc0] sm:$0xff]
        %v503 = vld [vmem:[#allocation7 + $0xc8] sm:$0xff]
        %v504 = vld [vmem:[#allocation7 + $0xd0] sm:$0xff]
        %v505 = vld [vmem:[#allocation7 + $0xd8] sm:$0xff]
        %v506 = vld [vmem:[#allocation7 + $0xe0] sm:$0xff]
        %v507 = vld [vmem:[#allocation7 + $0xe8] sm:$0xff]
        %v508 = vld [vmem:[#allocation7 + $0xf0] sm:$0xff]
        %v509 = vld [vmem:[#allocation7 + $0xf8] sm:$0xff]
        %v510 = vld [vmem:[#allocation7 + $0x100] sm:$0xff]
        %v511 = vld [vmem:[#allocation7 + $0x108] sm:$0xff]
        %v512 = vld [vmem:[#allocation7 + $0x110] sm:$0xff]
        %v513 = vld [vmem:[#allocation2 + $0x1] sm:$0xff]
        %v514 = vld [vmem:[#allocation2 + $0x9] sm:$0xff]
        %v515 = vld [vmem:[#allocation2 + $0x19] sm:$0xff]
        %v516 = vld [vmem:[#allocation2 + $0x21] sm:$0xff]
        %v517 = vld [vmem:[#allocation2 + $0x31] sm:$0xff]
        %v518 = vld [vmem:[#allocation2 + $0x39] sm:$0xff]
        %v519 = vld [vmem:[#allocation2 + $0x49] sm:$0xff]
        %v520 = vld [vmem:[#allocation2 + $0x51] sm:$0xff]
        %v521 = vld [vmem:[#allocation2 + $0x61] sm:$0xff]
        %v522 = vld [vmem:[#allocation2 + $0x69] sm:$0xff]
        %v523 = vld [vmem:[#allocation2 + $0x79] sm:$0xff]
        %v524 = vld [vmem:[#allocation2 + $0x81] sm:$0xff]
        %v525 = vld [vmem:[#allocation2 + $0x91] sm:$0xff]
        %v526 = vld [vmem:[#allocation2 + $0x99] sm:$0xff]
        %v527 = vld [vmem:[#allocation2 + $0xa9] sm:$0xff]
        %v528 = vld [vmem:[#allocation2 + $0xb1] sm:$0xff]
        %529 = vmatpush.msra.mxu0 %v512
        %530 = vmatpush.msra.mxu0 %v511
        %531 = vmatpush.msra.mxu0 %v510
        %532 = vmatpush.msra.mxu0 %v509
        %533 = vmatpush.msra.mxu0 %v508
        %534 = vmatpush.msra.mxu0 %v507
        %535 = vmatpush.msra.mxu0 %v506
        %536 = vmatpush.msra.mxu0 %v505
        %537 = vmatpush.msra.mxu0 %v504
        %538 = vmatpush.msra.mxu0 %v503
        %539 = vmatpush.msra.mxu0 %v502
        %540 = vmatpush.msra.mxu0 %v501
        %541 = vmatpush.msra.mxu0 %v500
        %542 = vmatpush.msra.mxu0 %v499
        %543 = vmatpush.msra.mxu0 %v498
        %544 = vmatpush.msra.mxu0 %v497
        %545 = vmatmul.f32.gmra.mxu0 %v513
        %v546 = vpop.f32.mrf.mxu0
        %v547 = vadd.f32 0.0, %v546
        %548 = vmatmul.f32.gmra.mxu0 %v514
        %v549 = vpop.f32.mrf.mxu0
        %v550 = vadd.f32 0.0, %v549
        %551 = vmatmul.f32.gmra.mxu0 %v515
        %v552 = vpop.f32.mrf.mxu0
        %v553 = vadd.f32 0.0, %v552
        %554 = vmatmul.f32.gmra.mxu0 %v516
        %v555 = vpop.f32.mrf.mxu0
        %v556 = vadd.f32 0.0, %v555
        %557 = vmatmul.f32.gmra.mxu0 %v517
        %v558 = vpop.f32.mrf.mxu0
        %v559 = vadd.f32 0.0, %v558
        %560 = vmatmul.f32.gmra.mxu0 %v518
        %v561 = vpop.f32.mrf.mxu0
        %v562 = vadd.f32 0.0, %v561
        %563 = vmatmul.f32.gmra.mxu0 %v519
        %v564 = vpop.f32.mrf.mxu0
        %v565 = vadd.f32 0.0, %v564
        %566 = vmatmul.f32.gmra.mxu0 %v520
        %v567 = vpop.f32.mrf.mxu0
        %v568 = vadd.f32 0.0, %v567
        %569 = vmatmul.f32.gmra.mxu0 %v521
        %v570 = vpop.f32.mrf.mxu0
        %v571 = vadd.f32 0.0, %v570
        %572 = vmatmul.f32.gmra.mxu0 %v522
        %v573 = vpop.f32.mrf.mxu0
        %v574 = vadd.f32 0.0, %v573
        %575 = vmatmul.f32.gmra.mxu0 %v523
        %v576 = vpop.f32.mrf.mxu0
        %v577 = vadd.f32 0.0, %v576
        %578 = vmatmul.f32.gmra.mxu0 %v524
        %v579 = vpop.f32.mrf.mxu0
        %v580 = vadd.f32 0.0, %v579
        %581 = vmatmul.f32.gmra.mxu0 %v525
        %v582 = vpop.f32.mrf.mxu0
        %v583 = vadd.f32 0.0, %v582
        %584 = vmatmul.f32.gmra.mxu0 %v526
        %v585 = vpop.f32.mrf.mxu0
        %v586 = vadd.f32 0.0, %v585
        %587 = vmatmul.f32.gmra.mxu0 %v527
        %v588 = vpop.f32.mrf.mxu0
        %v589 = vadd.f32 0.0, %v588
        %590 = vmatmul.f32.gmra.mxu0 %v528
        %v591 = vpop.f32.mrf.mxu0
        %v592 = vadd.f32 0.0, %v591
        %593 = vdwg.mxu0
        %594 = vmatpush.msra.mxu0 %v480
        %595 = vmatpush.msra.mxu0 %v479
        %596 = vmatpush.msra.mxu0 %v478
        %597 = vmatpush.msra.mxu0 %v477
        %598 = vmatpush.msra.mxu0 %v476
        %599 = vmatpush.msra.mxu0 %v475
        %600 = vmatpush.msra.mxu0 %v474
        %601 = vmatpush.msra.mxu0 %v473
        %602 = vmatpush.msra.mxu0 %v472
        %603 = vmatpush.msra.mxu0 %v471
        %604 = vmatpush.msra.mxu0 %v470
        %605 = vmatpush.msra.mxu0 %v469
        %606 = vmatpush.msra.mxu0 %v468
        %607 = vmatpush.msra.mxu0 %v467
        %608 = vmatpush.msra.mxu0 %v466
        %609 = vmatpush.msra.mxu0 %v465
        %610 = vmatmul.f32.gmra.mxu0 %v481
        %v611 = vpop.f32.mrf.mxu0
        %v612 = vadd.f32 %v547, %v611
        %613 = vmatmul.f32.gmra.mxu0 %v482
        %v614 = vpop.f32.mrf.mxu0
        %v615 = vadd.f32 %v550, %v614
        %616 = vmatmul.f32.gmra.mxu0 %v483
        %v617 = vpop.f32.mrf.mxu0
        %v618 = vadd.f32 %v553, %v617
        %619 = vmatmul.f32.gmra.mxu0 %v484
        %v620 = vpop.f32.mrf.mxu0
        %v621 = vadd.f32 %v556, %v620
        %622 = vmatmul.f32.gmra.mxu0 %v485
        %v623 = vpop.f32.mrf.mxu0
        %v624 = vadd.f32 %v559, %v623
        %625 = vmatmul.f32.gmra.mxu0 %v486
        %v626 = vpop.f32.mrf.mxu0
        %v627 = vadd.f32 %v562, %v626
        %628 = vmatmul.f32.gmra.mxu0 %v487
        %v629 = vpop.f32.mrf.mxu0
        %v630 = vadd.f32 %v565, %v629
        %631 = vmatmul.f32.gmra.mxu0 %v488
        %v632 = vpop.f32.mrf.mxu0
        %v633 = vadd.f32 %v568, %v632
        %634 = vmatmul.f32.gmra.mxu0 %v489
        %v635 = vpop.f32.mrf.mxu0
        %v636 = vadd.f32 %v571, %v635
        %637 = vmatmul.f32.gmra.mxu0 %v490
        %v638 = vpop.f32.mrf.mxu0
        %v639 = vadd.f32 %v574, %v638
        %640 = vmatmul.f32.gmra.mxu0 %v491
        %v641 = vpop.f32.mrf.mxu0
        %v642 = vadd.f32 %v577, %v641
        %643 = vmatmul.f32.gmra.mxu0 %v492
        %v644 = vpop.f32.mrf.mxu0
        %v645 = vadd.f32 %v580, %v644
        %646 = vmatmul.f32.gmra.mxu0 %v493
        %v647 = vpop.f32.mrf.mxu0
        %v648 = vadd.f32 %v583, %v647
        %649 = vmatmul.f32.gmra.mxu0 %v494
        %v650 = vpop.f32.mrf.mxu0
        %v651 = vadd.f32 %v586, %v650
        %652 = vmatmul.f32.gmra.mxu0 %v495
        %v653 = vpop.f32.mrf.mxu0
        %v654 = vadd.f32 %v589, %v653
        %655 = vmatmul.f32.gmra.mxu0 %v496
        %v656 = vpop.f32.mrf.mxu0
        %v657 = vadd.f32 %v592, %v656
        %658 = vdwg.mxu0
        %v659 = vld [vmem:[#allocation7 + $0x118] sm:$0xff]
        %v660 = vld [vmem:[#allocation7 + $0x120] sm:$0xff]
        %v661 = vld [vmem:[#allocation7 + $0x128] sm:$0xff]
        %v662 = vld [vmem:[#allocation7 + $0x130] sm:$0xff]
        %v663 = vld [vmem:[#allocation7 + $0x138] sm:$0xff]
        %v664 = vld [vmem:[#allocation7 + $0x140] sm:$0xff]
        %v665 = vld [vmem:[#allocation7 + $0x148] sm:$0xff]
        %v666 = vld [vmem:[#allocation7 + $0x150] sm:$0xff]
        %v667 = vld [vmem:[#allocation7 + $0x158] sm:$0xff]
        %v668 = vld [vmem:[#allocation7 + $0x160] sm:$0xff]
        %v669 = vld [vmem:[#allocation7 + $0x168] sm:$0xff]
        %v670 = vld [vmem:[#allocation7 + $0x170] sm:$0xff]
        %v671 = vld [vmem:[#allocation7 + $0x178] sm:$0xff]
        %v672 = vld [vmem:[#allocation7 + $0x180] sm:$0xff]
        %v673 = vld [vmem:[#allocation7 + $0x188] sm:$0xff]
        %v674 = vld [vmem:[#allocation7 + $0x190] sm:$0xff]
        %v675 = vld [vmem:[#allocation2 + $0x2] sm:$0xff]
        %v676 = vld [vmem:[#allocation2 + $0xa] sm:$0xff]
        %v677 = vld [vmem:[#allocation2 + $0x1a] sm:$0xff]
        %v678 = vld [vmem:[#allocation2 + $0x22] sm:$0xff]
        %v679 = vld [vmem:[#allocation2 + $0x32] sm:$0xff]
        %v680 = vld [vmem:[#allocation2 + $0x3a] sm:$0xff]
        %v681 = vld [vmem:[#allocation2 + $0x4a] sm:$0xff]
        %v682 = vld [vmem:[#allocation2 + $0x52] sm:$0xff]
        %v683 = vld [vmem:[#allocation2 + $0x62] sm:$0xff]
        %v684 = vld [vmem:[#allocation2 + $0x6a] sm:$0xff]
        %v685 = vld [vmem:[#allocation2 + $0x7a] sm:$0xff]
        %v686 = vld [vmem:[#allocation2 + $0x82] sm:$0xff]
        %v687 = vld [vmem:[#allocation2 + $0x92] sm:$0xff]
        %v688 = vld [vmem:[#allocation2 + $0x9a] sm:$0xff]
        %v689 = vld [vmem:[#allocation2 + $0xaa] sm:$0xff]
        %v690 = vld [vmem:[#allocation2 + $0xb2] sm:$0xff]
        %691 = vmatpush.msra.mxu0 %v674
        %692 = vmatpush.msra.mxu0 %v673
        %693 = vmatpush.msra.mxu0 %v672
        %694 = vmatpush.msra.mxu0 %v671
        %695 = vmatpush.msra.mxu0 %v670
        %696 = vmatpush.msra.mxu0 %v669
        %697 = vmatpush.msra.mxu0 %v668
        %698 = vmatpush.msra.mxu0 %v667
        %699 = vmatpush.msra.mxu0 %v666
        %700 = vmatpush.msra.mxu0 %v665
        %701 = vmatpush.msra.mxu0 %v664
        %702 = vmatpush.msra.mxu0 %v663
        %703 = vmatpush.msra.mxu0 %v662
        %704 = vmatpush.msra.mxu0 %v661
        %705 = vmatpush.msra.mxu0 %v660
        %706 = vmatpush.msra.mxu0 %v659
        %707 = vmatmul.f32.gmra.mxu0 %v675
        %v708 = vpop.f32.mrf.mxu0
        %v709 = vadd.f32 0.0, %v708
        %710 = vmatmul.f32.gmra.mxu0 %v676
        %v711 = vpop.f32.mrf.mxu0
        %v712 = vadd.f32 0.0, %v711
        %713 = vmatmul.f32.gmra.mxu0 %v677
        %v714 = vpop.f32.mrf.mxu0
        %v715 = vadd.f32 0.0, %v714
        %716 = vmatmul.f32.gmra.mxu0 %v678
        %v717 = vpop.f32.mrf.mxu0
        %v718 = vadd.f32 0.0, %v717
        %719 = vmatmul.f32.gmra.mxu0 %v679
        %v720 = vpop.f32.mrf.mxu0
        %v721 = vadd.f32 0.0, %v720
        %722 = vmatmul.f32.gmra.mxu0 %v680
        %v723 = vpop.f32.mrf.mxu0
        %v724 = vadd.f32 0.0, %v723
        %725 = vmatmul.f32.gmra.mxu0 %v681
        %v726 = vpop.f32.mrf.mxu0
        %v727 = vadd.f32 0.0, %v726
        %728 = vmatmul.f32.gmra.mxu0 %v682
        %v729 = vpop.f32.mrf.mxu0
        %v730 = vadd.f32 0.0, %v729
        %731 = vmatmul.f32.gmra.mxu0 %v683
        %v732 = vpop.f32.mrf.mxu0
        %v733 = vadd.f32 0.0, %v732
        %734 = vmatmul.f32.gmra.mxu0 %v684
        %v735 = vpop.f32.mrf.mxu0
        %v736 = vadd.f32 0.0, %v735
        %737 = vmatmul.f32.gmra.mxu0 %v685
        %v738 = vpop.f32.mrf.mxu0
        %v739 = vadd.f32 0.0, %v738
        %740 = vmatmul.f32.gmra.mxu0 %v686
        %v741 = vpop.f32.mrf.mxu0
        %v742 = vadd.f32 0.0, %v741
        %743 = vmatmul.f32.gmra.mxu0 %v687
        %v744 = vpop.f32.mrf.mxu0
        %v745 = vadd.f32 0.0, %v744
        %746 = vmatmul.f32.gmra.mxu0 %v688
        %v747 = vpop.f32.mrf.mxu0
        %v748 = vadd.f32 0.0, %v747
        %749 = vmatmul.f32.gmra.mxu0 %v689
        %v750 = vpop.f32.mrf.mxu0
        %v751 = vadd.f32 0.0, %v750
        %752 = vmatmul.f32.gmra.mxu0 %v690
        %v753 = vpop.f32.mrf.mxu0
        %v754 = vadd.f32 0.0, %v753
        %755 = vdwg.mxu0
        %v756 = vadd.f32 %v612, %v709
        %v757 = vadd.f32 %v615, %v712
        %v758 = vadd.f32 %v618, %v715
        %v759 = vadd.f32 %v621, %v718
        %v760 = vadd.f32 %v624, %v721
        %v761 = vadd.f32 %v627, %v724
        %v762 = vadd.f32 %v630, %v727
        %v763 = vadd.f32 %v633, %v730
        %v764 = vadd.f32 %v636, %v733
        %v765 = vadd.f32 %v639, %v736
        %v766 = vadd.f32 %v642, %v739
        %v767 = vadd.f32 %v645, %v742
        %v768 = vadd.f32 %v648, %v745
        %v769 = vadd.f32 %v651, %v748
        %v770 = vadd.f32 %v654, %v751
        %v771 = vadd.f32 %v657, %v754
        %v772 = vld [vmem:[%s2 + $0x1] sm:$0x1]
        %v773 = vperm.slane %v772, 0
        %v774 = vadd.f32 %v756, %v773
        %v775 = vadd.f32 %v757, %v773
        %v776 = vadd.f32 %v758, %v773
        %v777 = vadd.f32 %v759, %v773
        %v778 = vadd.f32 %v760, %v773
        %v779 = vadd.f32 %v761, %v773
        %v780 = vadd.f32 %v762, %v773
        %v781 = vadd.f32 %v763, %v773
        %v782 = vadd.f32 %v764, %v773
        %v783 = vadd.f32 %v765, %v773
        %v784 = vadd.f32 %v766, %v773
        %v785 = vadd.f32 %v767, %v773
        %v786 = vadd.f32 %v768, %v773
        %v787 = vadd.f32 %v769, %v773
        %v788 = vadd.f32 %v770, %v773
        %v789 = vadd.f32 %v771, %v773
        %v790 = vmax.f32 %v774, 0.0
        %v791 = vmax.f32 %v775, 0.0
        %v792 = vmax.f32 %v776, 0.0
        %v793 = vmax.f32 %v777, 0.0
        %v794 = vmax.f32 %v778, 0.0
        %v795 = vmax.f32 %v779, 0.0
        %v796 = vmax.f32 %v780, 0.0
        %v797 = vmax.f32 %v781, 0.0
        %v798 = vmax.f32 %v782, 0.0
        %v799 = vmax.f32 %v783, 0.0
        %v800 = vmax.f32 %v784, 0.0
        %v801 = vmax.f32 %v785, 0.0
        %v802 = vmax.f32 %v786, 0.0
        %v803 = vmax.f32 %v787, 0.0
        %v804 = vmax.f32 %v788, 0.0
        %v805 = vmax.f32 %v789, 0.0
        %v806 = vadd.f32 %v790, %v791
        %v807 = vrot.slane %v806, 4
        %v808 = vadd.f32 %v806, %v807
        %v809 = vrot.slane %v808, 2
        %v810 = vadd.f32 %v808, %v809
        %v811 = vrot.slane %v810, 1
        %v812 = vadd.f32 %v810, %v811
        %v813 = vadd.f32 %v792, %v793
        %v814 = vrot.slane %v813, 4
        %v815 = vadd.f32 %v813, %v814
        %v816 = vrot.slane %v815, 2
        %v817 = vadd.f32 %v815, %v816
        %v818 = vrot.slane %v817, 1
        %v819 = vadd.f32 %v817, %v818
        %v820 = vadd.f32 %v794, %v795
        %v821 = vrot.slane %v820, 4
        %v822 = vadd.f32 %v820, %v821
        %v823 = vrot.slane %v822, 2
        %v824 = vadd.f32 %v822, %v823
        %v825 = vrot.slane %v824, 1
        %v826 = vadd.f32 %v824, %v825
        %v827 = vadd.f32 %v796, %v797
        %v828 = vrot.slane %v827, 4
        %v829 = vadd.f32 %v827, %v828
        %v830 = vrot.slane %v829, 2
        %v831 = vadd.f32 %v829, %v830
        %v832 = vrot.slane %v831, 1
        %v833 = vadd.f32 %v831, %v832
        %v834 = vadd.f32 %v798, %v799
        %v835 = vrot.slane %v834, 4
        %v836 = vadd.f32 %v834, %v835
        %v837 = vrot.slane %v836, 2
        %v838 = vadd.f32 %v836, %v837
        %v839 = vrot.slane %v838, 1
        %v840 = vadd.f32 %v838, %v839
        %v841 = vadd.f32 %v800, %v801
        %v842 = vrot.slane %v841, 4
        %v843 = vadd.f32 %v841, %v842
        %v844 = vrot.slane %v843, 2
        %v845 = vadd.f32 %v843, %v844
        %v846 = vrot.slane %v845, 1
        %v847 = vadd.f32 %v845, %v846
        %v848 = vadd.f32 %v802, %v803
        %v849 = vrot.slane %v848, 4
        %v850 = vadd.f32 %v848, %v849
        %v851 = vrot.slane %v850, 2
        %v852 = vadd.f32 %v850, %v851
        %v853 = vrot.slane %v852, 1
        %v854 = vadd.f32 %v852, %v853
        %v855 = vadd.f32 %v804, %v805
        %v856 = vrot.slane %v855, 4
        %v857 = vadd.f32 %v855, %v856
        %v858 = vrot.slane %v857, 2
        %v859 = vadd.f32 %v857, %v858
        %v860 = vrot.slane %v859, 1
        %v861 = vadd.f32 %v859, %v860
        %v862 = vmul.f32 %v812, 0.0625
        %v863 = vmul.f32 %v819, 0.0625
        %v864 = vmul.f32 %v826, 0.0625
        %v865 = vmul.f32 %v833, 0.0625
        %v866 = vmul.f32 %v840, 0.0625
        %v867 = vmul.f32 %v847, 0.0625
        %v868 = vmul.f32 %v854, 0.0625
        %v869 = vmul.f32 %v861, 0.0625
        %v870 = vld [vmem:[#allocation9] sm:$0xff]
        %v871 = vld [vmem:[#allocation9 + $0x8] sm:$0xff]
        %v872 = vld [vmem:[#allocation9 + $0x10] sm:$0xff]
        %v873 = vld [vmem:[#allocation9 + $0x18] sm:$0xff]
        %v874 = vld [vmem:[#allocation9 + $0x20] sm:$0xff]
        %v875 = vld [vmem:[#allocation9 + $0x28] sm:$0xff]
        %v876 = vld [vmem:[#allocation9 + $0x30] sm:$0xff]
        %v877 = vld [vmem:[#allocation9 + $0x38] sm:$0xff]
        %v878 = vld [vmem:[#allocation9 + $0x40] sm:$0xff]
        %v879 = vld [vmem:[#allocation9 + $0x48] sm:$0xff]
        %v880 = vld [vmem:[#allocation9 + $0x50] sm:$0xff]
        %v881 = vld [vmem:[#allocation9 + $0x58] sm:$0xff]
        %v882 = vld [vmem:[#allocation9 + $0x60] sm:$0xff]
        %v883 = vld [vmem:[#allocation9 + $0x68] sm:$0xff]
        %v884 = vld [vmem:[#allocation9 + $0x70] sm:$0xff]
        %v885 = vld [vmem:[#allocation9 + $0x78] sm:$0xff]
        %v886 = vld [vmem:[#allocation3] sm:$0x1]
        %v888 = vperm.slane %v886, 0
        %889 = vset.pattern.permute.xlu0 0
        %890 = vperm.xlu0 %889, %v888
        %v891 = vpop.permute.xlu0 %890
        %vm901 = vcmask 1041409
        %v902 = vsel %vm901, %v863, %v862
        %vm903 = vcmask 1042434
        %v904 = vsel %vm903, %v864, %v902
        %vm905 = vcmask 1043459
        %v906 = vsel %vm905, %v865, %v904
        %vm907 = vcmask 1044484
        %v908 = vsel %vm907, %v866, %v906
        %vm909 = vcmask 1045509
        %v910 = vsel %vm909, %v867, %v908
        %vm911 = vcmask 1046534
        %v912 = vsel %vm911, %v868, %v910
        %vm913 = vcmask 1047559
        %v914 = vsel %vm913, %v869, %v912
        %916 = vmatpush.msra.mxu0 %v885
        %917 = vmatpush.msra.mxu0 %v884
        %918 = vmatpush.msra.mxu0 %v883
        %919 = vmatpush.msra.mxu0 %v882
        %920 = vmatpush.msra.mxu0 %v881
        %921 = vmatpush.msra.mxu0 %v880
        %922 = vmatpush.msra.mxu0 %v879
        %923 = vmatpush.msra.mxu0 %v878
        %924 = vmatpush.msra.mxu0 %v877
        %925 = vmatpush.msra.mxu0 %v876
        %926 = vmatpush.msra.mxu0 %v875
        %927 = vmatpush.msra.mxu0 %v874
        %928 = vmatpush.msra.mxu0 %v873
        %929 = vmatpush.msra.mxu0 %v872
        %930 = vmatpush.msra.mxu0 %v871
        %931 = vmatpush.msra.mxu0 %v870
        %932 = vmatmul.f32.gmra.mxu0 %v914
        %v933 = vpop.f32.mrf.mxu0
        %v934 = vadd.f32 %v891, %v933
        %935 = vdwg.mxu0
        %936 = vst [vmem:[%s280] sm:$0xff] %v934
        %s937 = sand.u32 %s143, 1
        %s938 = scalar_lea.sflag [#allocation6], %s937
        %s939 = sand.u32 %s143, 1
        %s940 = smul.addr %s939, 8
        %s941 = scalar_lea.vmem [#allocation10], %s940
        // Predicated region
        $region53: #{tpu_custom_call.1} parent=39 // pred_check
          %p942 = pneg %p153
        $region54: #{tpu_custom_call.1} parent=39 // pred_check_branch
          %944 = sbr.rel (%p942) target = $region56
        $region55: #{tpu_custom_call.1} parent=39 // pred_region
          %946 = vsyncadd %s938, 0
          %s947 = smul.addr %s25, 8
          %s948 = scalar_lea.hbm %s5, %s947
          %s950 = sshll.u32 %s941, 4
          %s951 = int_to_ptr.vmem [resolvable:$true] %s950
          %s952 = sshll.u32 %s948, 4
          %s953 = int_to_ptr.hbm [resolvable:$true] %s952
          %955 = dma.vmem_to_hbm [thread:$0]  %s951, 128, %s953, %s938
        $region56: #{tpu_custom_call.1} parent=39 // pred_fallthru
          _
      $region40: #{tpu_custom_call.1} parent=5 // pred_fallthru
        _
      %p956 = scmp.le.s32.totalorder 2, %s20
      // Predicated region
      $region57: #{tpu_custom_call.1} parent=5 // pred_check
        %p957 = pneg %p956
      $region58: #{tpu_custom_call.1} parent=5 // pred_check_branch
        %959 = sbr.rel (%p957) target = $region60
      $region59: #{tpu_custom_call.1} parent=5 // pred_region
        %s960 = ssub.s32 %s20, 2
        // Predicated region
        $region61: #{tpu_custom_call.1} parent=59 // pred_check
          %p961 = pneg %p159
        $region62: #{tpu_custom_call.1} parent=59 // pred_check_branch
          %963 = sbr.rel (%p961) target = $region64
        $region63: #{tpu_custom_call.1} parent=59 // pred_region
          %s964 = sand.u32 %s144, 1
          %s965 = scalar_lea.sflag [#allocation6], %s964
          %s966 = sand.u32 %s144, 1
          %s967 = smul.addr %s966, 8
          %s968 = scalar_lea.vmem [#allocation10], %s967
          %970 = dma.done %s965, 128
        $region64: #{tpu_custom_call.1} parent=59 // pred_fallthru
          _
      $region60: #{tpu_custom_call.1} parent=5 // pred_fallthru
        _
    $region6: #{tpu_custom_call.1} parent=1 // loop_footer
      %s24 = sadd.s32 1, %s20
    $region7: #{tpu_custom_call.1} parent=1 // loop_footer_branch
      %19 = sbr.rel target = $region3
    $region8: #{tpu_custom_call.1} parent=1 // loop_exit
      _
    %971 = vsyncpa [#allocation5], 1
    %s972 = scalar_lea.sflag [#allocation5], 1
    %973 = vsyncpa %s972, 1
    %974 = vsyncpa [#allocation8], 1
    %975 = vsyncpa [#allocation6], 1
    %s976 = scalar_lea.sflag [#allocation6], 1
    %977 = vsyncpa %s976, 1

</llo_original>
